<compile_context>
chip_gen: v5e
topology: v5e:2x2
jax: 0.10.0
libtpu: 0.0.40
codegen_flags: <defaults>
</compile_context>

<pallas_src>
import functools

import jax
import jax.numpy as jnp
from jax import lax
from jax.experimental import pallas as pl
from jax.experimental.pallas import tpu as pltpu

BN_EPS = 1e-5
LANE = 128


def _round_up(n, m):
    return ((n + m - 1) // m) * m


# --------------------------------------------------------------------------- #
# fused kernel: conv1 -> BN1 -> ReLU -> conv2 -> BN2 -> ReLU on (C, Np) slabs
# --------------------------------------------------------------------------- #
def _down_fused_kernel(x_ref, m_ref, w1_ref, w2_ref,
                       g1_ref, b1_ref, g2_ref, b2_ref, o_ref, *, n_valid):
    Np = x_ref.shape[-1]
    keep_l = m_ref[0:1, :]   # (1, Np): position has a valid left neighbour in its sample
    keep_r = m_ref[1:2, :]   # (1, Np): position has a valid right neighbour in its sample
    valid = m_ref[2:3, :]    # (1, Np): real (non-pad) position
    inv_n = 1.0 / float(n_valid)

    def conv_bn_relu(y, w_ref, g_ref, b_ref):
        # 'same' 3-tap conv as ONE bf16 MXU matmul: taps stacked on the K axis.
        y_m1 = pltpu.roll(y, shift=1, axis=1) * keep_l          # x[l-1] (zero at sample start)
        y_p1 = pltpu.roll(y, shift=Np - 1, axis=1) * keep_r     # x[l+1] (zero at sample end)
        stacked = jnp.concatenate([y_m1, y, y_p1], axis=0).astype(jnp.bfloat16)  # (3*Ci, Np)
        h = jnp.dot(w_ref[...], stacked, preferred_element_type=jnp.float32)     # (Co, Np) f32

        # Whole-batch BatchNorm statistics (training mode), centered accumulation.
        mu = jnp.sum(h * valid, axis=-1, keepdims=True) * inv_n                  # (Co, 1)
        d = (h - mu) * valid
        var = jnp.sum(d * d, axis=-1, keepdims=True) * inv_n                     # (Co, 1)
        scale = g_ref[...] * lax.rsqrt(var + BN_EPS)
        shift = b_ref[...] - mu * scale
        return jnp.maximum(h * scale + shift, 0.0)

    y1 = conv_bn_relu(x_ref[...], w1_ref, g1_ref, b1_ref)       # (Cmid, Np)
    o_ref[...] = conv_bn_relu(y1, w2_ref, g2_ref, b2_ref)       # (Cout, Np)


# --------------------------------------------------------------------------- #
# wrapper
# --------------------------------------------------------------------------- #
def down_forward(x, w1, g1, b1, w2, g2, b2, scale_factor):
    """x: (B, Cin, L) f32; w1: (Cmid, Cin, 3); w2: (Cout, Cmid, 3); g*/b*: (C,)."""
    B, Cin, L = x.shape
    s = int(scale_factor)
    Lp = L // s
    Cmid = w1.shape[0]
    Cout = w2.shape[0]
    N = B * Lp
    Np = max(LANE, _round_up(N, LANE))   # lane-dense (multiple-of-128) slab width

    # MaxPool1d(scale) + layout plumbing (channels -> sublanes, batch*length -> lanes).
    pooled = jnp.max(x[:, :, :Lp * s].reshape(B, Cin, Lp, s), axis=-1)           # (B, Cin, Lp)
    x_flat = jnp.transpose(pooled, (1, 0, 2)).reshape(Cin, N)                    # (Cin, N)
    x_in = jnp.pad(x_flat, ((0, 0), (0, Np - N)))                                # (Cin, Np)

    # Per-position 0/1 masks (computed once by XLA, tiny): column j = b*Lp + l.
    idx = jnp.arange(Np, dtype=jnp.int32)
    pos = idx % Lp
    real = idx < N
    keep_l = ((pos >= 1) & real).astype(jnp.float32)
    keep_r = ((pos <= Lp - 2) & real).astype(jnp.float32)
    masks = jnp.stack([keep_l, keep_r, real.astype(jnp.float32)], axis=0)        # (3, Np)

    # Tap-stacked bf16 weights: row co = [w[co,:,0] | w[co,:,1] | w[co,:,2]],
    # matching the [y(l-1); y(l); y(l+1)] K-axis blocks built in-kernel.
    w1s = jnp.transpose(w1, (0, 2, 1)).reshape(Cmid, 3 * Cin).astype(jnp.bfloat16)
    w2s = jnp.transpose(w2, (0, 2, 1)).reshape(Cout, 3 * Cmid).astype(jnp.bfloat16)

    g1c, b1c = g1.reshape(Cmid, 1).astype(jnp.float32), b1.reshape(Cmid, 1).astype(jnp.float32)
    g2c, b2c = g2.reshape(Cout, 1).astype(jnp.float32), b2.reshape(Cout, 1).astype(jnp.float32)

    # Rough resident-VMEM estimate (f32 slabs + bf16 tap stacks + output).
    est = 4 * Np * (Cin + 3 + Cmid + 2 * Cout) + 2 * Np * 3 * (Cin + Cmid) + 65536
    if est > 40 * 1024 * 1024:
        # TODO(synk): lane-axis tiling with cross-tile BN-stat reduction for large inputs.
        raise NotImplementedError("Down: input too large for the fused single-pass kernel")

    def full(shape):
        return pl.BlockSpec(shape, lambda i, _nd=len(shape): (0,) * _nd)

    out_flat = pl.pallas_call(
        functools.partial(_down_fused_kernel, n_valid=N),
        grid=(1,),
        in_specs=[full((Cin, Np)), full((3, Np)),
                  full((Cmid, 3 * Cin)), full((Cout, 3 * Cmid)),
                  full((Cmid, 1)), full((Cmid, 1)),
                  full((Cout, 1)), full((Cout, 1))],
        out_specs=full((Cout, Np)),
        out_shape=jax.ShapeDtypeStruct((Cout, Np), jnp.float32),
        compiler_params=pltpu.CompilerParams(
            dimension_semantics=("arbitrary",),
            vmem_limit_bytes=int(min(48 * 1024 * 1024, max(32 * 1024 * 1024, 2 * est))),
        ),
    )(x_in, masks, w1s, w2s, g1c, b1c, g2c, b2c)

    # Layout plumbing back to (B, Cout, Lp).
    return jnp.transpose(out_flat[:, :N].reshape(Cout, B, Lp), (1, 0, 2))


# --------------------------------------------------------------------------- #
# pure-JAX reference (f32, HIGHEST precision) for verification
# --------------------------------------------------------------------------- #
def down_reference(x, w1, g1, b1, w2, g2, b2, s):
    B, Cin, L = x.shape
    Lp = L // s
    xp = jnp.max(x[:, :, :Lp * s].reshape(B, Cin, Lp, s), axis=-1)

    def conv(h, w):
        dn = lax.conv_dimension_numbers(h.shape, w.shape, ("NCH", "OIH", "NCH"))
        return lax.conv_general_dilated(h, w, (1,), [(1, 1)],
                                        dimension_numbers=dn,
                                        precision=lax.Precision.HIGHEST)

    def bn_relu(h, g, b):
        mu = h.mean(axis=(0, 2), keepdims=True)
        var = ((h - mu) ** 2).mean(axis=(0, 2), keepdims=True)
        hn = (h - mu) / jnp.sqrt(var + BN_EPS)
        return jnp.maximum(hn * g[None, :, None] + b[None, :, None], 0.0)

    h = bn_relu(conv(xp, w1), g1, b1)
    h = bn_relu(conv(h, w2), g2, b2)
    return h


if __name__ == "__main__":
    # Shapes consistent with Down(in_channels=4, out_channels=8, scale_factor=2)
    B, Cin, Cout, L, scale = 2, 4, 8, 16, 2
    Cmid = Cout

    key = jax.random.PRNGKey(0)
    ks = jax.random.split(key, 7)
    x = jax.random.normal(ks[0], (B, Cin, L), dtype=jnp.float32)
    w1 = 0.3 * jax.random.normal(ks[1], (Cmid, Cin, 3), dtype=jnp.float32)
    g1 = 1.0 + 0.1 * jax.random.normal(ks[2], (Cmid,), dtype=jnp.float32)
    b1 = 0.1 * jax.random.normal(ks[3], (Cmid,), dtype=jnp.float32)
    w2 = 0.3 * jax.random.normal(ks[4], (Cout, Cmid, 3), dtype=jnp.float32)
    g2 = 1.0 + 0.1 * jax.random.normal(ks[5], (Cout,), dtype=jnp.float32)
    b2 = 0.1 * jax.random.normal(ks[6], (Cout,), dtype=jnp.float32)

    out = jax.block_until_ready(down_forward(x, w1, g1, b1, w2, g2, b2, scale))
    ref = jax.block_until_ready(down_reference(x, w1, g1, b1, w2, g2, b2, scale))

    assert out.shape == (B, Cout, L // scale), out.shape
    max_err = float(jnp.max(jnp.abs(out - ref)))
    assert jnp.allclose(out, ref, rtol=2e-2, atol=3e-2), max_err  # bf16 MXU conv
    print("KERNEL_OK")
</pallas_src>

<mosaic_0001>
module attributes {stable_mosaic.version = 11 : i64} {
  func.func @_down_fused_kernel(%arg0: i32, %arg1: memref<4x128xf32, #tpu.memory_space<vmem>>, %arg2: memref<3x128xf32, #tpu.memory_space<vmem>>, %arg3: memref<8x12xbf16, #tpu.memory_space<vmem>>, %arg4: memref<8x24xbf16, #tpu.memory_space<vmem>>, %arg5: memref<8x1xf32, #tpu.memory_space<vmem>>, %arg6: memref<8x1xf32, #tpu.memory_space<vmem>>, %arg7: memref<8x1xf32, #tpu.memory_space<vmem>>, %arg8: memref<8x1xf32, #tpu.memory_space<vmem>>, %arg9: memref<8x128xf32, #tpu.memory_space<vmem>>) attributes {dimension_semantics = [#tpu.dimension_semantics<arbitrary>], iteration_bounds = array<i64: 1>, scalar_prefetch = 0 : i64, scratch_operands = 0 : i64, tpu.core_type = #tpu.core_type<tc>, window_params = [{pipeline_mode = #tpu.pipeline_mode<synchronous>, transform_indices = @transform_0, window_bounds = array<i64: 4, 128>}, {pipeline_mode = #tpu.pipeline_mode<synchronous>, transform_indices = @transform_1, window_bounds = array<i64: 3, 128>}, {pipeline_mode = #tpu.pipeline_mode<synchronous>, transform_indices = @transform_2, window_bounds = array<i64: 8, 12>}, {pipeline_mode = #tpu.pipeline_mode<synchronous>, transform_indices = @transform_3, window_bounds = array<i64: 8, 24>}, {pipeline_mode = #tpu.pipeline_mode<synchronous>, transform_indices = @transform_4, window_bounds = array<i64: 8, 1>}, {pipeline_mode = #tpu.pipeline_mode<synchronous>, transform_indices = @transform_5, window_bounds = array<i64: 8, 1>}, {pipeline_mode = #tpu.pipeline_mode<synchronous>, transform_indices = @transform_6, window_bounds = array<i64: 8, 1>}, {pipeline_mode = #tpu.pipeline_mode<synchronous>, transform_indices = @transform_7, window_bounds = array<i64: 8, 1>}, {pipeline_mode = #tpu.pipeline_mode<synchronous>, transform_indices = @transform_8, window_bounds = array<i64: 8, 128>}]} {
    %c0 = arith.constant 0 : index
    %c0_0 = arith.constant 0 : index
    %0 = vector.load %arg2[%c0, %c0_0] : memref<3x128xf32, #tpu.memory_space<vmem>>, vector<1x128xf32>
    %c1 = arith.constant 1 : index
    %c0_1 = arith.constant 0 : index
    %1 = vector.load %arg2[%c1, %c0_1] : memref<3x128xf32, #tpu.memory_space<vmem>>, vector<1x128xf32>
    %c2 = arith.constant 2 : index
    %c0_2 = arith.constant 0 : index
    %2 = vector.load %arg2[%c2, %c0_2] : memref<3x128xf32, #tpu.memory_space<vmem>>, vector<1x128xf32>
    %c0_3 = arith.constant 0 : index
    %c0_4 = arith.constant 0 : index
    %3 = vector.load %arg1[%c0_3, %c0_4] : memref<4x128xf32, #tpu.memory_space<vmem>>, vector<4x128xf32>
    %c1_i32 = arith.constant 1 : i32
    %4 = tpu.dynamic_rotate %3 by %c1_i32 dim 1 : vector<4x128xf32>, i32 -> vector<4x128xf32>
    %5 = vector.broadcast %0 : vector<1x128xf32> to vector<4x128xf32>
    %6 = arith.mulf %4, %5 : vector<4x128xf32>
    %c127_i32 = arith.constant 127 : i32
    %7 = tpu.dynamic_rotate %3 by %c127_i32 dim 1 : vector<4x128xf32>, i32 -> vector<4x128xf32>
    %8 = vector.broadcast %1 : vector<1x128xf32> to vector<4x128xf32>
    %9 = arith.mulf %7, %8 : vector<4x128xf32>
    %10 = tpu.concatenate %6, %3, %9 in 0 : vector<4x128xf32>, vector<4x128xf32>, vector<4x128xf32> -> vector<12x128xf32>
    %11 = arith.truncf %10 : vector<12x128xf32> to vector<12x128xbf16>
    %c0_5 = arith.constant 0 : index
    %c0_6 = arith.constant 0 : index
    %12 = vector.load %arg3[%c0_5, %c0_6] : memref<8x12xbf16, #tpu.memory_space<vmem>>, vector<8x12xbf16>
    %cst = arith.constant dense<0.000000e+00> : vector<8x128xf32>
    %13 = tpu.matmul %12, %11, %cst {dimension_numbers = #tpu.dot_dimension_numbers<[1], [0], [0], [1], [0, 0, 1, 1], [], []>} : vector<8x12xbf16>, vector<12x128xbf16>, vector<8x128xf32> -> vector<8x128xf32>
    %14 = vector.broadcast %2 : vector<1x128xf32> to vector<8x128xf32>
    %15 = arith.mulf %13, %14 : vector<8x128xf32>
    %cst_7 = arith.constant dense<0.000000e+00> : vector<8xf32>
    %16 = vector.multi_reduction <add>, %15, %cst_7 [1] : vector<8x128xf32> to vector<8xf32>
    %17 = vector.shape_cast %16 : vector<8xf32> to vector<8x1xf32>
    %cst_8 = arith.constant 6.250000e-02 : f32
    %18 = vector.broadcast %cst_8 : f32 to vector<8x1xf32>
    %19 = arith.mulf %17, %18 : vector<8x1xf32>
    %20 = vector.broadcast %19 : vector<8x1xf32> to vector<8x128xf32>
    %21 = arith.subf %13, %20 : vector<8x128xf32>
    %22 = vector.broadcast %2 : vector<1x128xf32> to vector<8x128xf32>
    %23 = arith.mulf %21, %22 : vector<8x128xf32>
    %24 = arith.mulf %23, %23 : vector<8x128xf32>
    %cst_9 = arith.constant dense<0.000000e+00> : vector<8xf32>
    %25 = vector.multi_reduction <add>, %24, %cst_9 [1] : vector<8x128xf32> to vector<8xf32>
    %26 = vector.shape_cast %25 : vector<8xf32> to vector<8x1xf32>
    %cst_10 = arith.constant 6.250000e-02 : f32
    %27 = vector.broadcast %cst_10 : f32 to vector<8x1xf32>
    %28 = arith.mulf %26, %27 : vector<8x1xf32>
    %c0_11 = arith.constant 0 : index
    %c0_12 = arith.constant 0 : index
    %29 = vector.load %arg5[%c0_11, %c0_12] : memref<8x1xf32, #tpu.memory_space<vmem>>, vector<8x1xf32>
    %cst_13 = arith.constant 9.99999974E-6 : f32
    %30 = vector.broadcast %cst_13 : f32 to vector<8x1xf32>
    %31 = arith.addf %28, %30 : vector<8x1xf32>
    %32 = math.rsqrt %31 : vector<8x1xf32>
    %33 = arith.mulf %29, %32 : vector<8x1xf32>
    %c0_14 = arith.constant 0 : index
    %c0_15 = arith.constant 0 : index
    %34 = vector.load %arg6[%c0_14, %c0_15] : memref<8x1xf32, #tpu.memory_space<vmem>>, vector<8x1xf32>
    %35 = arith.mulf %19, %33 : vector<8x1xf32>
    %36 = arith.subf %34, %35 : vector<8x1xf32>
    %37 = vector.broadcast %33 : vector<8x1xf32> to vector<8x128xf32>
    %38 = arith.mulf %13, %37 : vector<8x128xf32>
    %39 = vector.broadcast %36 : vector<8x1xf32> to vector<8x128xf32>
    %40 = arith.addf %38, %39 : vector<8x128xf32>
    %cst_16 = arith.constant 0.000000e+00 : f32
    %41 = vector.broadcast %cst_16 : f32 to vector<8x128xf32>
    %42 = arith.maximumf %40, %41 : vector<8x128xf32>
    %c1_i32_17 = arith.constant 1 : i32
    %43 = tpu.dynamic_rotate %42 by %c1_i32_17 dim 1 : vector<8x128xf32>, i32 -> vector<8x128xf32>
    %44 = vector.broadcast %0 : vector<1x128xf32> to vector<8x128xf32>
    %45 = arith.mulf %43, %44 : vector<8x128xf32>
    %c127_i32_18 = arith.constant 127 : i32
    %46 = tpu.dynamic_rotate %42 by %c127_i32_18 dim 1 : vector<8x128xf32>, i32 -> vector<8x128xf32>
    %47 = vector.broadcast %1 : vector<1x128xf32> to vector<8x128xf32>
    %48 = arith.mulf %46, %47 : vector<8x128xf32>
    %49 = tpu.concatenate %45, %42, %48 in 0 : vector<8x128xf32>, vector<8x128xf32>, vector<8x128xf32> -> vector<24x128xf32>
    %50 = arith.truncf %49 : vector<24x128xf32> to vector<24x128xbf16>
    %c0_19 = arith.constant 0 : index
    %c0_20 = arith.constant 0 : index
    %51 = vector.load %arg4[%c0_19, %c0_20] : memref<8x24xbf16, #tpu.memory_space<vmem>>, vector<8x24xbf16>
    %cst_21 = arith.constant dense<0.000000e+00> : vector<8x128xf32>
    %52 = tpu.matmul %51, %50, %cst_21 {dimension_numbers = #tpu.dot_dimension_numbers<[1], [0], [0], [1], [0, 0, 1, 1], [], []>} : vector<8x24xbf16>, vector<24x128xbf16>, vector<8x128xf32> -> vector<8x128xf32>
    %53 = vector.broadcast %2 : vector<1x128xf32> to vector<8x128xf32>
    %54 = arith.mulf %52, %53 : vector<8x128xf32>
    %cst_22 = arith.constant dense<0.000000e+00> : vector<8xf32>
    %55 = vector.multi_reduction <add>, %54, %cst_22 [1] : vector<8x128xf32> to vector<8xf32>
    %56 = vector.shape_cast %55 : vector<8xf32> to vector<8x1xf32>
    %cst_23 = arith.constant 6.250000e-02 : f32
    %57 = vector.broadcast %cst_23 : f32 to vector<8x1xf32>
    %58 = arith.mulf %56, %57 : vector<8x1xf32>
    %59 = vector.broadcast %58 : vector<8x1xf32> to vector<8x128xf32>
    %60 = arith.subf %52, %59 : vector<8x128xf32>
    %61 = vector.broadcast %2 : vector<1x128xf32> to vector<8x128xf32>
    %62 = arith.mulf %60, %61 : vector<8x128xf32>
    %63 = arith.mulf %62, %62 : vector<8x128xf32>
    %cst_24 = arith.constant dense<0.000000e+00> : vector<8xf32>
    %64 = vector.multi_reduction <add>, %63, %cst_24 [1] : vector<8x128xf32> to vector<8xf32>
    %65 = vector.shape_cast %64 : vector<8xf32> to vector<8x1xf32>
    %cst_25 = arith.constant 6.250000e-02 : f32
    %66 = vector.broadcast %cst_25 : f32 to vector<8x1xf32>
    %67 = arith.mulf %65, %66 : vector<8x1xf32>
    %c0_26 = arith.constant 0 : index
    %c0_27 = arith.constant 0 : index
    %68 = vector.load %arg7[%c0_26, %c0_27] : memref<8x1xf32, #tpu.memory_space<vmem>>, vector<8x1xf32>
    %cst_28 = arith.constant 9.99999974E-6 : f32
    %69 = vector.broadcast %cst_28 : f32 to vector<8x1xf32>
    %70 = arith.addf %67, %69 : vector<8x1xf32>
    %71 = math.rsqrt %70 : vector<8x1xf32>
    %72 = arith.mulf %68, %71 : vector<8x1xf32>
    %c0_29 = arith.constant 0 : index
    %c0_30 = arith.constant 0 : index
    %73 = vector.load %arg8[%c0_29, %c0_30] : memref<8x1xf32, #tpu.memory_space<vmem>>, vector<8x1xf32>
    %74 = arith.mulf %58, %72 : vector<8x1xf32>
    %75 = arith.subf %73, %74 : vector<8x1xf32>
    %76 = vector.broadcast %72 : vector<8x1xf32> to vector<8x128xf32>
    %77 = arith.mulf %52, %76 : vector<8x128xf32>
    %78 = vector.broadcast %75 : vector<8x1xf32> to vector<8x128xf32>
    %79 = arith.addf %77, %78 : vector<8x128xf32>
    %cst_31 = arith.constant 0.000000e+00 : f32
    %80 = vector.broadcast %cst_31 : f32 to vector<8x128xf32>
    %81 = arith.maximumf %79, %80 : vector<8x128xf32>
    %c0_32 = arith.constant 0 : index
    %c0_33 = arith.constant 0 : index
    %82 = vector.load %arg9[%c0_32, %c0_33] : memref<8x128xf32, #tpu.memory_space<vmem>>, vector<8x128xf32>
    tpu.vector_store %arg9[%c0_32, %c0_33], %81 {strides = array<i32>} : memref<8x128xf32, #tpu.memory_space<vmem>>, vector<8x128xf32>,
    return
  }
  func.func @transform_0(%arg0: i32) -> (i32, i32) {
    %c0_i32 = arith.constant 0 : i32
    %c0_i32_0 = arith.constant 0 : i32
    %c0_i32_1 = arith.constant 0 : i32
    return %c0_i32, %c0_i32_0 : i32, i32
  }
  func.func @transform_1(%arg0: i32) -> (i32, i32) {
    %c0_i32 = arith.constant 0 : i32
    %c0_i32_0 = arith.constant 0 : i32
    %c0_i32_1 = arith.constant 0 : i32
    return %c0_i32, %c0_i32_0 : i32, i32
  }
  func.func @transform_2(%arg0: i32) -> (i32, i32) {
    %c0_i32 = arith.constant 0 : i32
    %c0_i32_0 = arith.constant 0 : i32
    %c0_i32_1 = arith.constant 0 : i32
    return %c0_i32, %c0_i32_0 : i32, i32
  }
  func.func @transform_3(%arg0: i32) -> (i32, i32) {
    %c0_i32 = arith.constant 0 : i32
    %c0_i32_0 = arith.constant 0 : i32
    %c0_i32_1 = arith.constant 0 : i32
    return %c0_i32, %c0_i32_0 : i32, i32
  }
  func.func @transform_4(%arg0: i32) -> (i32, i32) {
    %c0_i32 = arith.constant 0 : i32
    %c0_i32_0 = arith.constant 0 : i32
    %c0_i32_1 = arith.constant 0 : i32
    return %c0_i32, %c0_i32_0 : i32, i32
  }
  func.func @transform_5(%arg0: i32) -> (i32, i32) {
    %c0_i32 = arith.constant 0 : i32
    %c0_i32_0 = arith.constant 0 : i32
    %c0_i32_1 = arith.constant 0 : i32
    return %c0_i32, %c0_i32_0 : i32, i32
  }
  func.func @transform_6(%arg0: i32) -> (i32, i32) {
    %c0_i32 = arith.constant 0 : i32
    %c0_i32_0 = arith.constant 0 : i32
    %c0_i32_1 = arith.constant 0 : i32
    return %c0_i32, %c0_i32_0 : i32, i32
  }
  func.func @transform_7(%arg0: i32) -> (i32, i32) {
    %c0_i32 = arith.constant 0 : i32
    %c0_i32_0 = arith.constant 0 : i32
    %c0_i32_1 = arith.constant 0 : i32
    return %c0_i32, %c0_i32_0 : i32, i32
  }
  func.func @transform_8(%arg0: i32) -> (i32, i32) {
    %c0_i32 = arith.constant 0 : i32
    %c0_i32_0 = arith.constant 0 : i32
    %c0_i32_1 = arith.constant 0 : i32
    return %c0_i32, %c0_i32_0 : i32, i32
  }
}

</mosaic_0001>

<llo_original>
// kernel: tpu_custom_call.1
$region0: #{tpu_custom_call.1}
  #allocation0 [shape = 'u32[]', space=smem, size = 0x4, offset = 0x4, fixed_abs, tag = 'smem constant byte address 0x4 - core index']
  #allocation1 [shape = 'u32[72,128]{1,0:T(1,128)}', space=vmem, size = 0x9000, scoped, tag = 'internal scratch']
  %s0 = inlined_call_operand.vmem [shape: f32[4,128], index: 0, kind: input, shape index: {}]
  %s1 = inlined_call_operand.vmem [shape: f32[3,128], index: 1, kind: input, shape index: {}]
  %s2 = inlined_call_operand.vmem [shape: bf16[8,12], index: 2, kind: input, shape index: {}]
  %s3 = inlined_call_operand.vmem [shape: bf16[8,24], index: 3, kind: input, shape index: {}]
  %s4 = inlined_call_operand.vmem [shape: f32[8,1], index: 4, kind: input, shape index: {}]
  %s5 = inlined_call_operand.vmem [shape: f32[8,1], index: 5, kind: input, shape index: {}]
  %s6 = inlined_call_operand.vmem [shape: f32[8,1], index: 6, kind: input, shape index: {}]
  %s7 = inlined_call_operand.vmem [shape: f32[8,1], index: 7, kind: input, shape index: {}]
  %s8 = inlined_call_operand.hbm [shape: f32[8,128], index: 8, kind: output, shape index: {}]
  %s9 = sld [smem:[#allocation0]]
  $region42: #{tpu_custom_call.1} parent=0
    _
  %s11 = ssub.s32 1, %s9
  %s12 = scalar_select 0, %s11, %s9
  $region1: #{tpu_custom_call.1} parent=0
    #allocation2 [shape = 'u8[4096]{0}', space=vmem, size = 0x1000, scoped, tag = 'output window, operand 0, single buffered']
    #allocation3 [shape = 's32[1]{0}', space=sflag, size = 0x4, scoped, tag = 'scoped memory for tpu_custom_call.1']
    %13 = vsyncpa [#allocation3], 0
    // Predicated region
    $region2: #{tpu_custom_call.1} parent=1 // pred_check
      _
    $region3: #{tpu_custom_call.1} parent=1 // pred_check_branch
      %15 = sbr.rel (0) target = $region5
    $region4: #{tpu_custom_call.1} parent=1 // pred_region
      _
    $region5: #{tpu_custom_call.1} parent=1 // pred_fallthru
      _
    // Predicated region
    $region6: #{tpu_custom_call.1} parent=1 // pred_check
      _
    $region7: #{tpu_custom_call.1} parent=1 // pred_check_branch
      %17 = sbr.rel (0) target = $region9
    $region8: #{tpu_custom_call.1} parent=1 // pred_region
      _
    $region9: #{tpu_custom_call.1} parent=1 // pred_fallthru
      _
    // Predicated region
    $region10: #{tpu_custom_call.1} parent=1 // pred_check
      _
    $region11: #{tpu_custom_call.1} parent=1 // pred_check_branch
      %19 = sbr.rel (0) target = $region13
    $region12: #{tpu_custom_call.1} parent=1 // pred_region
      _
    $region13: #{tpu_custom_call.1} parent=1 // pred_fallthru
      _
    // Predicated region
    $region14: #{tpu_custom_call.1} parent=1 // pred_check
      _
    $region15: #{tpu_custom_call.1} parent=1 // pred_check_branch
      %21 = sbr.rel (0) target = $region17
    $region16: #{tpu_custom_call.1} parent=1 // pred_region
      _
    $region17: #{tpu_custom_call.1} parent=1 // pred_fallthru
      _
    // Predicated region
    $region18: #{tpu_custom_call.1} parent=1 // pred_check
      _
    $region19: #{tpu_custom_call.1} parent=1 // pred_check_branch
      %23 = sbr.rel (0) target = $region21
    $region20: #{tpu_custom_call.1} parent=1 // pred_region
      _
    $region21: #{tpu_custom_call.1} parent=1 // pred_fallthru
      _
    // Predicated region
    $region22: #{tpu_custom_call.1} parent=1 // pred_check
      _
    $region23: #{tpu_custom_call.1} parent=1 // pred_check_branch
      %25 = sbr.rel (0) target = $region25
    $region24: #{tpu_custom_call.1} parent=1 // pred_region
      _
    $region25: #{tpu_custom_call.1} parent=1 // pred_fallthru
      _
    // Predicated region
    $region26: #{tpu_custom_call.1} parent=1 // pred_check
      _
    $region27: #{tpu_custom_call.1} parent=1 // pred_check_branch
      %27 = sbr.rel (0) target = $region29
    $region28: #{tpu_custom_call.1} parent=1 // pred_region
      _
    $region29: #{tpu_custom_call.1} parent=1 // pred_fallthru
      _
    // Predicated region
    $region30: #{tpu_custom_call.1} parent=1 // pred_check
      _
    $region31: #{tpu_custom_call.1} parent=1 // pred_check_branch
      %29 = sbr.rel (0) target = $region33
    $region32: #{tpu_custom_call.1} parent=1 // pred_region
      _
    $region33: #{tpu_custom_call.1} parent=1 // pred_fallthru
      _
    %v31 = vld [vmem:[%s1] sm:$0x1]
    %v32 = vld [vmem:[%s1 + $0x1] sm:$0x1]
    %v33 = vld [vmem:[%s1 + $0x2] sm:$0x1]
    %v34 = vld [vmem:[%s0] sm:$0xf]
    %35 = vrot.lane.b32.xlu0 %v34, 1
    %v36 = vpop.permute.xlu0 %35
    %v37 = vperm.slane %v31, 0
    %v38 = vmul.f32 %v36, %v37
    %39 = vrot.lane.b32.xlu0 %v34, 127
    %v40 = vpop.permute.xlu0 %39
    %v41 = vperm.slane %v32, 0
    %v42 = vmul.f32 %v40, %v41
    %v44 = vrot.slane %v34, 4
    %vm46 = vcmask 1043456
    %v47 = vsel %vm46, %v38, %v44
    %v48 = vpack.c.bf16 %v42, %v47
    %v49 = vld [vmem:[%s2] sm:$0xf]
    %vm50 = vcmask 97280
    %v52 = vsel %vm50, %v49, 0
    %vm54 = vcmask 1045504
    %v56 = vsel %vm54, %v48, 0
    %58 = vmatpush.bf16.msra.mxu0 0
    %59 = vmatpush.bf16.msra.mxu0 0
    %60 = vmatpush.bf16.msra.mxu0 0
    %61 = vmatpush.bf16.msra.mxu0 0
    %62 = vmatpush.bf16.msra.mxu0 0
    %63 = vmatpush.bf16.msra.mxu0 0
    %64 = vmatpush.bf16.msra.mxu0 0
    %65 = vmatpush.bf16.msra.mxu0 %v56
    %66 = vmatmul.bf16.gmra.mxu0 %v52
    %v67 = vpop.f32.mrf.mxu0
    %v68 = vadd.f32 0.0, %v67
    %v69 = vpop.f32.mrf.mxu0
    %70 = vdwg.mxu0
    %v71 = vperm.slane %v33, 0
    %v72 = vmul.f32 %v68, %v71
    %73 = vadd.xlane.f32.xlu0 %v72
    %v74 = vpop.xlane.xlu0 %73
    %v75 = vmul.f32 %v74, 0.0625
    %v76 = vsub.f32 %v68, %v75
    %v77 = vmul.f32 %v76, %v71
    %v78 = vmul.f32 %v77, %v77
    %79 = vadd.xlane.f32.xlu0 %v78
    %v80 = vpop.xlane.xlu0 %79
    %v81 = vmul.f32 %v80, 0.0625
    %v82 = vld [vmem:[%s4] sm:$0xff]
    %v83 = vadd.f32 %v81, 1e-05
    %v84 = vrsqrt.pop %v83
    %v85 = vmul.f32 %v84, %v83
    %v86 = vmul.f32 %v85, %v84
    %v87 = vmul.f32 0.5, %v86
    %v88 = vsub.f32 1.5, %v87
    %v89 = vmul.f32 %v84, %v88
    %vm90 = vweird.f32 %v83
    %vm91 = vweird.f32 %v84
    %vm92 = vmor %vm90, %vm91
    %v93 = vsel %vm92, %v84, %v89
    %v94 = vmul.f32 %v82, %v93
    %v95 = vld [vmem:[%s5] sm:$0xff]
    %v96 = vmul.f32 %v75, %v94
    %v97 = vsub.f32 %v95, %v96
    %99 = vset.pattern.permute.xlu0 0
    %100 = vperm.xlu0 %99, %v94
    %v101 = vpop.permute.xlu0 %100
    %v103 = vmul.f32 %v68, %v101
    %105 = vset.pattern.permute.xlu0 0
    %106 = vperm.xlu0 %105, %v97
    %v107 = vpop.permute.xlu0 %106
    %v109 = vadd.f32 %v103, %v107
    %v110 = vmax.f32 %v109, 0.0
    %111 = vrot.lane.b32.xlu0 %v110, 1
    %v112 = vpop.permute.xlu0 %111
    %v113 = vmul.f32 %v112, %v37
    %114 = vrot.lane.b32.xlu0 %v110, 127
    %v115 = vpop.permute.xlu0 %114
    %v116 = vmul.f32 %v115, %v41
    %v117 = vpack.c.bf16 %v110, %v113
    %v118 = vpack.c.bf16 %v116, %v116
    %v119 = vld [vmem:[%s3] sm:$0xf]
    %vm120 = vcmask 195584
    %v122 = vsel %vm120, %v119, 0
    %v125 = vsel %vm46, %v118, 0
    %127 = vmatpush.bf16.msra.mxu0 0
    %128 = vmatpush.bf16.msra.mxu0 0
    %129 = vmatpush.bf16.msra.mxu0 0
    %130 = vmatpush.bf16.msra.mxu0 0
    %131 = vmatpush.bf16.msra.mxu0 0
    %132 = vmatpush.bf16.msra.mxu0 0
    %133 = vmatpush.bf16.msra.mxu0 %v125
    %134 = vmatpush.bf16.msra.mxu0 %v117
    %135 = vmatmul.bf16.gmra.mxu0 %v122
    %v136 = vpop.f32.mrf.mxu0
    %v137 = vadd.f32 0.0, %v136
    %v138 = vpop.f32.mrf.mxu0
    %139 = vdwg.mxu0
    %v140 = vmul.f32 %v137, %v71
    %141 = vadd.xlane.f32.xlu0 %v140
    %v142 = vpop.xlane.xlu0 %141
    %v143 = vmul.f32 %v142, 0.0625
    %v144 = vsub.f32 %v137, %v143
    %v145 = vmul.f32 %v144, %v71
    %v146 = vmul.f32 %v145, %v145
    %147 = vadd.xlane.f32.xlu0 %v146
    %v148 = vpop.xlane.xlu0 %147
    %v149 = vmul.f32 %v148, 0.0625
    %v150 = vld [vmem:[%s6] sm:$0xff]
    %v151 = vadd.f32 %v149, 1e-05
    %v152 = vrsqrt.pop %v151
    %v153 = vmul.f32 %v152, %v151
    %v154 = vmul.f32 %v153, %v152
    %v155 = vmul.f32 0.5, %v154
    %v156 = vsub.f32 1.5, %v155
    %v157 = vmul.f32 %v152, %v156
    %vm158 = vweird.f32 %v151
    %vm159 = vweird.f32 %v152
    %vm160 = vmor %vm158, %vm159
    %v161 = vsel %vm160, %v152, %v157
    %v162 = vmul.f32 %v150, %v161
    %v163 = vld [vmem:[%s7] sm:$0xff]
    %v164 = vmul.f32 %v143, %v162
    %v165 = vsub.f32 %v163, %v164
    %167 = vset.pattern.permute.xlu0 0
    %168 = vperm.xlu0 %167, %v162
    %v169 = vpop.permute.xlu0 %168
    %v171 = vmul.f32 %v137, %v169
    %173 = vset.pattern.permute.xlu0 0
    %174 = vperm.xlu0 %173, %v165
    %v175 = vpop.permute.xlu0 %174
    %v177 = vadd.f32 %v171, %v175
    %v178 = vmax.f32 %v177, 0.0
    %179 = vst [vmem:[#allocation2] sm:$0xff] %v178
    // Predicated region
    $region34: #{tpu_custom_call.1} parent=1 // pred_check
      _
    $region35: #{tpu_custom_call.1} parent=1 // pred_check_branch
      %181 = sbr.rel (0) target = $region37
    $region36: #{tpu_custom_call.1} parent=1 // pred_region
      %183 = vsyncadd [#allocation3], 0
      %s185 = sshll.u32 [#allocation2], 4
      %s186 = int_to_ptr.vmem [resolvable:$true] %s185
      %s187 = sshll.u32 %s8, 4
      %s188 = int_to_ptr.hbm [resolvable:$true] %s187
      %190 = dma.vmem_to_hbm [thread:$0]  %s186, 128, %s188, [#allocation3]
    $region37: #{tpu_custom_call.1} parent=1 // pred_fallthru
      _
    // Predicated region
    $region38: #{tpu_custom_call.1} parent=1 // pred_check
      _
    $region39: #{tpu_custom_call.1} parent=1 // pred_check_branch
      %192 = sbr.rel (0) target = $region41
    $region40: #{tpu_custom_call.1} parent=1 // pred_region
      %194 = dma.done [#allocation3], 128
    $region41: #{tpu_custom_call.1} parent=1 // pred_fallthru
      _
    %195 = vsyncpa [#allocation3], 1

</llo_original>
